<compile_context>
chip_gen: v7x
topology: tpu7x:2x2x1
jax: 0.10.0
libtpu: 0.0.40
codegen_flags: <defaults>
</compile_context>

<pallas_src>
import jax
import jax.numpy as jnp
from jax import lax
from jax.experimental import pallas as pl
from jax.experimental.pallas import tpu as pltpu

NUM_ITERS = 3
EPSILON = 0.05


def _round_up(n, m):
    return ((n + m - 1) // m) * m


def _physical_vmem_bytes():
    try:
        info = pltpu.get_tpu_info()
        v = int(getattr(info, "vmem_capacity_bytes", 0))
        if v > 0:
            return v
    except Exception:
        pass
    return 64 * 1024 * 1024  # conservative fallback (v7x-sized VMEM)


def _guard(v):
    # Padded (or fully-underflowed) rows/columns sum to 0; map those sums to 1
    # so the reciprocal stays finite.  Padded rows/cols are sliced off outside.
    return jnp.where(v > 0.0, v, 1.0)


# --------------------------------------------------------------------------
# Single-block path: whole (padded) array resident in VMEM.
# --------------------------------------------------------------------------
def _make_single_block_kernel(b_true, k_true, b_pad, k_pad, num_iters):
    assert num_iters >= 1
    inv_eps = float(1.0 / EPSILON)
    needs_mask = (b_pad != b_true) or (k_pad != k_true)

    def kernel(logits_ref, out_ref):
        x = logits_ref[...].astype(jnp.float32)
        # Overflow-safe exp; the per-column shift cancels at the first column
        # normalisation.  jnp.pad zero-fills, so padded entries give exp<=1
        # here and are zeroed by the single post-exp mask below.
        col_max = jnp.max(x, axis=0, keepdims=True)                  # [1, Kp]
        q = jnp.exp((x - col_max) * inv_eps)
        if needs_mask:
            rows = lax.broadcasted_iota(jnp.int32, (b_pad, k_pad), 0)
            cols = lax.broadcasted_iota(jnp.int32, (b_pad, k_pad), 1)
            q = jnp.where((rows < b_true) & (cols < k_true), q, 0.0)

        # q0 lives in the output VMEM buffer from here on: one full-size
        # working buffer; the iterations below only read it.
        out_ref[...] = q

        # First column normalisation fused with the exp pass (r_0 == 1).
        c = pl.reciprocal(_guard(jnp.sum(q, axis=0, keepdims=True)))  # [1, Kp]
        r = None
        for it in range(num_iters):                                   # static unroll
            if it > 0:
                # Column pass: s[k] = sum_b r[b] * q0[b,k]
                s = jnp.sum(out_ref[...] * r, axis=0, keepdims=True)
                c = pl.reciprocal(_guard(s))
            # Row pass: t[b] = sum_k q0[b,k] * c[k]
            t = jnp.sum(out_ref[...] * c, axis=1, keepdims=True)      # [Bp, 1]
            r = pl.reciprocal(_guard(t))

        # torch's trailing `Q *= B` cancels the last `/= B`; rows sum to 1.
        out_ref[...] = (out_ref[...] * c) * r

    return kernel


# --------------------------------------------------------------------------
# Tiled path: grid = (phase, B-tile).  Phases: 0 = column max, then for each
# iteration a column-sum phase and a row-sum phase, then one output phase.
# q0 is recomputed from the streamed logits tile each phase (no full-size
# resident buffer); Sinkhorn state lives in small persistent VMEM scratches.
# --------------------------------------------------------------------------
def _make_tiled_kernel(b_true, k_true, b_pad, k_pad, tb, num_iters):
    assert num_iters >= 1
    inv_eps = float(1.0 / EPSILON)
    needs_mask = (b_pad != b_true) or (k_pad != k_true)
    n_phases = 2 * num_iters + 2

    def kernel(logits_ref, out_ref, m_ref, sc_ref, r_ref):
        p = pl.program_id(0)
        t = pl.program_id(1)
        n_t = pl.num_programs(1)
        row0 = pl.multiple_of(t * tb, 8)

        x = logits_ref[...].astype(jnp.float32)                      # [tb, Kp]

        def q0_tile():
            q = jnp.exp((x - m_ref[...]) * inv_eps)
            if needs_mask:
                rows = lax.broadcasted_iota(jnp.int32, (tb, k_pad), 0) + t * tb
                cols = lax.broadcasted_iota(jnp.int32, (tb, k_pad), 1)
                q = jnp.where((rows < b_true) & (cols < k_true), q, 0.0)
            return q

        is_col = (p % 2 == 1) & (p != n_phases - 1)   # p = 1, 3, ..., 2N-1
        is_row = (p % 2 == 0) & (p > 0)               # p = 2, 4, ..., 2N
        is_out = p == n_phases - 1                    # p = 2N+1

        # Phase 0: per-column max of the zero-padded logits; initialise r := 1.
        @pl.when(p == 0)
        def _():
            tmax = jnp.max(x, axis=0, keepdims=True)
            m_ref[...] = jnp.where(t == 0, tmax, jnp.maximum(m_ref[...], tmax))
            r_ref[pl.ds(row0, tb), :] = jnp.ones((tb, 1), jnp.float32)

        # Column phases: accumulate s[k] = sum_b r[b]*q0[b,k] across B-tiles;
        # on the last tile convert it in place to the column scale c = 1/s.
        @pl.when(is_col)
        def _():
            q = q0_tile()
            rloc = r_ref[pl.ds(row0, tb), :]                         # [tb, 1]
            part = jnp.sum(q * rloc, axis=0, keepdims=True)          # [1, Kp]
            acc = jnp.where(t == 0, part, sc_ref[...] + part)
            inv = pl.reciprocal(_guard(acc))
            sc_ref[...] = jnp.where(t == n_t - 1, inv, acc)

        # Row phases: r[b] = 1 / sum_k q0[b,k]*c[k]   (tile-local rows).
        @pl.when(is_row)
        def _():
            q = q0_tile()
            tsum = jnp.sum(q * sc_ref[...], axis=1, keepdims=True)   # [tb, 1]
            r_ref[pl.ds(row0, tb), :] = pl.reciprocal(_guard(tsum))

        # Final phase: materialise the transport-plan tile  r * q0 * c.
        @pl.when(is_out)
        def _():
            q = q0_tile()
            rloc = r_ref[pl.ds(row0, tb), :]
            out_ref[...] = (q * sc_ref[...]) * rloc

    return kernel


# --------------------------------------------------------------------------
# Wrapper with per-generation VMEM caps and size-based dispatch.
# --------------------------------------------------------------------------
def sinkhorn_knopp(logits, num_iters=NUM_ITERS, *, force_tiled=False, tile_b=None):
    assert logits.ndim == 2 and num_iters >= 1
    b, k = logits.shape
    k_pad = _round_up(k, 128)                  # lane-dense loads/stores
    in_item = jnp.dtype(logits.dtype).itemsize

    phys = _physical_vmem_bytes()
    cap = (phys * 3) // 4                      # never request more than ~75% of physical

    # Single-block footprint: input block + output block (holds q0) + one
    # transient full-size f32 value during the exp pass + slack.
    b_pad_sb = _round_up(b, 8)
    sb_bytes = b_pad_sb * k_pad * (in_item + 2 * 4) + (1 << 20)
    # Prefer the streamed/tiled path earlier on small-VMEM / fast-HBM parts (v7x).
    frac = 0.5 if phys <= (64 << 20) else 0.75
    use_single = (not force_tiled) and sb_bytes <= int(phys * frac)

    if use_single:
        b_pad = b_pad_sb
        x = logits
        if (b_pad, k_pad) != (b, k):
            x = jnp.pad(x, ((0, b_pad - b), (0, k_pad - k)))
        # TODO(synk): stream the input in [tb, Kp] chunks (emit_pipeline) to hide
        # the input DMA behind the exp pass even in this resident path.
        out = pl.pallas_call(
            _make_single_block_kernel(b, k, b_pad, k_pad, num_iters),
            out_shape=jax.ShapeDtypeStruct((b_pad, k_pad), jnp.float32),
            in_specs=[pl.BlockSpec((b_pad, k_pad), lambda: (0, 0))],
            out_specs=pl.BlockSpec((b_pad, k_pad), lambda: (0, 0)),
            compiler_params=pltpu.CompilerParams(
                vmem_limit_bytes=int(min(cap, max(sb_bytes, 4 << 20)))),
            cost_estimate=pl.CostEstimate(
                flops=(4 * num_iters + 6) * b_pad * k_pad,
                transcendentals=b_pad * k_pad,
                bytes_accessed=(in_item + 4) * b_pad * k_pad),
        )(x)
    else:
        n_phases = 2 * num_iters + 2
        # Persistent scratches: column max + column scale ([1,Kp] each, 8-sublane
        # padded) and row scales ([Bp,1], 128-lane padded).
        scratch_bytes = 2 * 8 * k_pad * 4 + _round_up(b, 8) * 512 + (2 << 20)
        per_row = k_pad * 2 * (in_item + 4)    # double-buffered input + output block
        if tile_b is not None:
            tb = int(tile_b)
        else:
            tb = max(8, min(1024, (cap - scratch_bytes) // per_row))
            tb -= tb % 8
            tb = min(tb, _round_up(b, 8))
        assert tb >= 8 and tb % 8 == 0
        b_pad = _round_up(b, tb)
        n_t = b_pad // tb
        x = logits
        if (b_pad, k_pad) != (b, k):
            x = jnp.pad(x, ((0, b_pad - b), (0, k_pad - k)))
        tiled_bytes = tb * per_row + scratch_bytes

        out = pl.pallas_call(
            _make_tiled_kernel(b, k, b_pad, k_pad, tb, num_iters),
            out_shape=jax.ShapeDtypeStruct((b_pad, k_pad), jnp.float32),
            grid_spec=pltpu.PrefetchScalarGridSpec(
                num_scalar_prefetch=0,
                grid=(n_phases, n_t),
                in_specs=[pl.BlockSpec((tb, k_pad), lambda p, t: (t, 0))],
                # Output blocks are only materialised in the final phase; the
                # constant block index for p < last suppresses per-phase HBM
                # write-backs (exactly one write per output block).
                out_specs=pl.BlockSpec(
                    (tb, k_pad), lambda p, t: (t * (p // (n_phases - 1)), 0)),
                scratch_shapes=[
                    pltpu.VMEM((1, k_pad), jnp.float32),   # column max m
                    pltpu.VMEM((1, k_pad), jnp.float32),   # column sum -> scale c
                    pltpu.VMEM((b_pad, 1), jnp.float32),   # row scales r
                ]),
            compiler_params=pltpu.CompilerParams(
                dimension_semantics=("arbitrary", "arbitrary"),
                vmem_limit_bytes=int(min(cap, max(tiled_bytes, 4 << 20)))),
            cost_estimate=pl.CostEstimate(
                flops=3 * n_phases * b_pad * k_pad,
                transcendentals=(n_phases - 1) * b_pad * k_pad,
                bytes_accessed=n_phases * in_item * b_pad * k_pad + 4 * b_pad * k_pad),
        )(x)

    if (b_pad, k_pad) != (b, k):
        out = out[:b, :k]
    return out


def _reference(logits, num_iters=NUM_ITERS, epsilon=EPSILON):
    # Faithful pure-JAX transcription of the PyTorch module.
    Q = jnp.exp(logits.astype(jnp.float32) / epsilon).T
    B = Q.shape[1]
    K = Q.shape[0]
    Q = Q / jnp.sum(Q)
    for _ in range(num_iters):
        Q = Q / jnp.sum(Q, axis=1, keepdims=True)
        Q = Q / K
        Q = Q / jnp.sum(Q, axis=0, keepdims=True)
        Q = Q / B
    Q = Q * B
    return Q.T


if __name__ == "__main__":
    key = jax.random.PRNGKey(0)

    def check(out, ref, name):
        assert out.shape == ref.shape and out.dtype == jnp.float32, name
        assert bool(jnp.allclose(jnp.sum(out, axis=1), 1.0, rtol=1e-5, atol=1e-5)), name
        assert bool(jnp.allclose(out, ref, rtol=2e-4, atol=2e-6)), name

    k1, k2, k3 = jax.random.split(key, 3)

    # 1) single-block path with lane/sublane padding (B=8, K=32 -> 8x128 tile).
    x1 = jax.random.normal(k1, (8, 32), dtype=jnp.float32)
    out1 = jax.block_until_ready(sinkhorn_knopp(x1))
    check(out1, _reference(x1), "single-block padded")

    # 2) single-block path, fully aligned.
    x2 = jax.random.normal(k2, (16, 128), dtype=jnp.float32)
    out2 = jax.block_until_ready(sinkhorn_knopp(x2))
    check(out2, _reference(x2), "single-block aligned")

    # 3) tiled path (forced), aligned: grid = (2*3+2 phases, 4 B-tiles).
    x3 = jax.random.normal(k3, (32, 128), dtype=jnp.float32)
    out3 = jax.block_until_ready(sinkhorn_knopp(x3, force_tiled=True, tile_b=8))
    check(out3, _reference(x3), "tiled aligned")

    # 4) tiled path (forced) with row and column padding (B=20 -> 24, K=96 -> 128).
    x4 = jax.random.normal(key, (20, 96), dtype=jnp.float32)
    out4 = jax.block_until_ready(sinkhorn_knopp(x4, force_tiled=True, tile_b=8))
    check(out4, _reference(x4), "tiled padded")

    print("KERNEL_OK")
</pallas_src>

<mosaic_0001>
module attributes {stable_mosaic.version = 11 : i64} {
  func.func @kernel(%arg0: memref<8x128xf32, #tpu.memory_space<vmem>>, %arg1: memref<8x128xf32, #tpu.memory_space<vmem>>) attributes {dimension_semantics = [], scalar_prefetch = 0 : i64, scratch_operands = 0 : i64, tpu.core_type = #tpu.core_type<tc>} {
    %c0 = arith.constant 0 : index
    %c0_0 = arith.constant 0 : index
    %0 = vector.load %arg0[%c0, %c0_0] : memref<8x128xf32, #tpu.memory_space<vmem>>, vector<8x128xf32>
    %cst = arith.constant dense<0xFF800000> : vector<128xf32>
    %1 = vector.multi_reduction <maximumf>, %0, %cst [0] : vector<8x128xf32> to vector<128xf32>
    %2 = vector.shape_cast %1 : vector<128xf32> to vector<1x128xf32>
    %3 = vector.broadcast %2 : vector<1x128xf32> to vector<8x128xf32>
    %4 = arith.subf %0, %3 : vector<8x128xf32>
    %cst_1 = arith.constant 2.000000e+01 : f32
    %5 = vector.broadcast %cst_1 : f32 to vector<8x128xf32>
    %6 = arith.mulf %4, %5 : vector<8x128xf32>
    %7 = math.exp %6 : vector<8x128xf32>
    %8 = tpu.iota {dimensions = array<i32: 0>} : vector<8x128xi32>
    %9 = tpu.iota {dimensions = array<i32: 1>} : vector<8x128xi32>
    %c8_i32 = arith.constant 8 : i32
    %10 = vector.broadcast %c8_i32 : i32 to vector<8x128xi32>
    %11 = arith.cmpi slt, %8, %10 : vector<8x128xi32>
    %c32_i32 = arith.constant 32 : i32
    %12 = vector.broadcast %c32_i32 : i32 to vector<8x128xi32>
    %13 = arith.cmpi slt, %9, %12 : vector<8x128xi32>
    %14 = arith.andi %11, %13 : vector<8x128xi1>
    %cst_2 = arith.constant 0.000000e+00 : f32
    %15 = vector.broadcast %cst_2 : f32 to vector<8x128xf32>
    %16 = arith.select %14, %7, %15 : vector<8x128xi1>, vector<8x128xf32>
    %c0_3 = arith.constant 0 : index
    %c0_4 = arith.constant 0 : index
    %17 = vector.load %arg1[%c0_3, %c0_4] : memref<8x128xf32, #tpu.memory_space<vmem>>, vector<8x128xf32>
    tpu.vector_store %arg1[%c0_3, %c0_4], %16 {strides = array<i32>} : memref<8x128xf32, #tpu.memory_space<vmem>>, vector<8x128xf32>,
    %cst_5 = arith.constant dense<0.000000e+00> : vector<128xf32>
    %18 = vector.multi_reduction <add>, %16, %cst_5 [0] : vector<8x128xf32> to vector<128xf32>
    %19 = vector.shape_cast %18 : vector<128xf32> to vector<1x128xf32>
    %cst_6 = arith.constant 0.000000e+00 : f32
    %20 = vector.broadcast %cst_6 : f32 to vector<1x128xf32>
    %21 = arith.cmpf ogt, %19, %20 : vector<1x128xf32>
    %cst_7 = arith.constant 1.000000e+00 : f32
    %22 = vector.broadcast %cst_7 : f32 to vector<1x128xf32>
    %23 = arith.select %21, %19, %22 : vector<1x128xi1>, vector<1x128xf32>
    %24 = tpu.reciprocal %23 : vector<1x128xf32> -> vector<1x128xf32>
    %c0_8 = arith.constant 0 : index
    %c0_9 = arith.constant 0 : index
    %25 = vector.load %arg1[%c0_8, %c0_9] : memref<8x128xf32, #tpu.memory_space<vmem>>, vector<8x128xf32>
    %26 = vector.broadcast %24 : vector<1x128xf32> to vector<8x128xf32>
    %27 = arith.mulf %25, %26 : vector<8x128xf32>
    %cst_10 = arith.constant dense<0.000000e+00> : vector<8xf32>
    %28 = vector.multi_reduction <add>, %27, %cst_10 [1] : vector<8x128xf32> to vector<8xf32>
    %29 = vector.shape_cast %28 : vector<8xf32> to vector<8x1xf32>
    %cst_11 = arith.constant 0.000000e+00 : f32
    %30 = vector.broadcast %cst_11 : f32 to vector<8x1xf32>
    %31 = arith.cmpf ogt, %29, %30 : vector<8x1xf32>
    %cst_12 = arith.constant 1.000000e+00 : f32
    %32 = vector.broadcast %cst_12 : f32 to vector<8x1xf32>
    %33 = arith.select %31, %29, %32 : vector<8x1xi1>, vector<8x1xf32>
    %34 = tpu.reciprocal %33 : vector<8x1xf32> -> vector<8x1xf32>
    %c0_13 = arith.constant 0 : index
    %c0_14 = arith.constant 0 : index
    %35 = vector.load %arg1[%c0_13, %c0_14] : memref<8x128xf32, #tpu.memory_space<vmem>>, vector<8x128xf32>
    %36 = vector.broadcast %34 : vector<8x1xf32> to vector<8x128xf32>
    %37 = arith.mulf %35, %36 : vector<8x128xf32>
    %cst_15 = arith.constant dense<0.000000e+00> : vector<128xf32>
    %38 = vector.multi_reduction <add>, %37, %cst_15 [0] : vector<8x128xf32> to vector<128xf32>
    %39 = vector.shape_cast %38 : vector<128xf32> to vector<1x128xf32>
    %cst_16 = arith.constant 0.000000e+00 : f32
    %40 = vector.broadcast %cst_16 : f32 to vector<1x128xf32>
    %41 = arith.cmpf ogt, %39, %40 : vector<1x128xf32>
    %cst_17 = arith.constant 1.000000e+00 : f32
    %42 = vector.broadcast %cst_17 : f32 to vector<1x128xf32>
    %43 = arith.select %41, %39, %42 : vector<1x128xi1>, vector<1x128xf32>
    %44 = tpu.reciprocal %43 : vector<1x128xf32> -> vector<1x128xf32>
    %c0_18 = arith.constant 0 : index
    %c0_19 = arith.constant 0 : index
    %45 = vector.load %arg1[%c0_18, %c0_19] : memref<8x128xf32, #tpu.memory_space<vmem>>, vector<8x128xf32>
    %46 = vector.broadcast %44 : vector<1x128xf32> to vector<8x128xf32>
    %47 = arith.mulf %45, %46 : vector<8x128xf32>
    %cst_20 = arith.constant dense<0.000000e+00> : vector<8xf32>
    %48 = vector.multi_reduction <add>, %47, %cst_20 [1] : vector<8x128xf32> to vector<8xf32>
    %49 = vector.shape_cast %48 : vector<8xf32> to vector<8x1xf32>
    %cst_21 = arith.constant 0.000000e+00 : f32
    %50 = vector.broadcast %cst_21 : f32 to vector<8x1xf32>
    %51 = arith.cmpf ogt, %49, %50 : vector<8x1xf32>
    %cst_22 = arith.constant 1.000000e+00 : f32
    %52 = vector.broadcast %cst_22 : f32 to vector<8x1xf32>
    %53 = arith.select %51, %49, %52 : vector<8x1xi1>, vector<8x1xf32>
    %54 = tpu.reciprocal %53 : vector<8x1xf32> -> vector<8x1xf32>
    %c0_23 = arith.constant 0 : index
    %c0_24 = arith.constant 0 : index
    %55 = vector.load %arg1[%c0_23, %c0_24] : memref<8x128xf32, #tpu.memory_space<vmem>>, vector<8x128xf32>
    %56 = vector.broadcast %54 : vector<8x1xf32> to vector<8x128xf32>
    %57 = arith.mulf %55, %56 : vector<8x128xf32>
    %cst_25 = arith.constant dense<0.000000e+00> : vector<128xf32>
    %58 = vector.multi_reduction <add>, %57, %cst_25 [0] : vector<8x128xf32> to vector<128xf32>
    %59 = vector.shape_cast %58 : vector<128xf32> to vector<1x128xf32>
    %cst_26 = arith.constant 0.000000e+00 : f32
    %60 = vector.broadcast %cst_26 : f32 to vector<1x128xf32>
    %61 = arith.cmpf ogt, %59, %60 : vector<1x128xf32>
    %cst_27 = arith.constant 1.000000e+00 : f32
    %62 = vector.broadcast %cst_27 : f32 to vector<1x128xf32>
    %63 = arith.select %61, %59, %62 : vector<1x128xi1>, vector<1x128xf32>
    %64 = tpu.reciprocal %63 : vector<1x128xf32> -> vector<1x128xf32>
    %c0_28 = arith.constant 0 : index
    %c0_29 = arith.constant 0 : index
    %65 = vector.load %arg1[%c0_28, %c0_29] : memref<8x128xf32, #tpu.memory_space<vmem>>, vector<8x128xf32>
    %66 = vector.broadcast %64 : vector<1x128xf32> to vector<8x128xf32>
    %67 = arith.mulf %65, %66 : vector<8x128xf32>
    %cst_30 = arith.constant dense<0.000000e+00> : vector<8xf32>
    %68 = vector.multi_reduction <add>, %67, %cst_30 [1] : vector<8x128xf32> to vector<8xf32>
    %69 = vector.shape_cast %68 : vector<8xf32> to vector<8x1xf32>
    %cst_31 = arith.constant 0.000000e+00 : f32
    %70 = vector.broadcast %cst_31 : f32 to vector<8x1xf32>
    %71 = arith.cmpf ogt, %69, %70 : vector<8x1xf32>
    %cst_32 = arith.constant 1.000000e+00 : f32
    %72 = vector.broadcast %cst_32 : f32 to vector<8x1xf32>
    %73 = arith.select %71, %69, %72 : vector<8x1xi1>, vector<8x1xf32>
    %74 = tpu.reciprocal %73 : vector<8x1xf32> -> vector<8x1xf32>
    %c0_33 = arith.constant 0 : index
    %c0_34 = arith.constant 0 : index
    %75 = vector.load %arg1[%c0_33, %c0_34] : memref<8x128xf32, #tpu.memory_space<vmem>>, vector<8x128xf32>
    %76 = vector.broadcast %64 : vector<1x128xf32> to vector<8x128xf32>
    %77 = arith.mulf %75, %76 : vector<8x128xf32>
    %78 = vector.broadcast %74 : vector<8x1xf32> to vector<8x128xf32>
    %79 = arith.mulf %77, %78 : vector<8x128xf32>
    %c0_35 = arith.constant 0 : index
    %c0_36 = arith.constant 0 : index
    %80 = vector.load %arg1[%c0_35, %c0_36] : memref<8x128xf32, #tpu.memory_space<vmem>>, vector<8x128xf32>
    tpu.vector_store %arg1[%c0_35, %c0_36], %79 {strides = array<i32>} : memref<8x128xf32, #tpu.memory_space<vmem>>, vector<8x128xf32>,
    return
  }
}

</mosaic_0001>

<llo_original>
// kernel: tpu_custom_call.1
$region0: #{tpu_custom_call.1}
  #allocation0 [shape = 'u32[]', space=smem, size = 0x4, offset = 0x4, fixed_abs, tag = 'smem constant byte address 0x4 - core index']
  #allocation1 [shape = 'u32[144,128]{1,0:T(1,128)}', space=vmem, size = 0x12000, scoped, tag = 'internal scratch']
  %s0 = inlined_call_operand.hbm [shape: f32[8,128], index: 0, kind: input, shape index: {}]
  %s1 = inlined_call_operand.hbm [shape: f32[8,128], index: 1, kind: output, shape index: {}]
  %s2 = sld [smem:[#allocation0]]
  $region18: #{tpu_custom_call.1} parent=0
    _
  %s4 = ssub.s32 1, %s2
  %s5 = scalar_select 0, %s4, %s2
  $region1: #{tpu_custom_call.1} parent=0
    #allocation2 [shape = 'u8[4096]{0}', space=vmem, size = 0x1000, scoped, tag = 'input window, operand 0, single buffered']
    #allocation3 [shape = 's32[1]{0}', space=sflag, size = 0x4, scoped, tag = 'scoped memory for tpu_custom_call.1']
    #allocation4 [shape = 's32[1]{0}', space=sflag, size = 0x4, scoped, tag = 'scoped memory for tpu_custom_call.1']
    #allocation5 [shape = 'u8[4096]{0}', space=vmem, size = 0x1000, scoped, tag = 'output window, operand 0, single buffered']
    %6 = vsyncpa [#allocation3], 0
    %7 = vsyncpa [#allocation4], 0
    // Predicated region
    $region2: #{tpu_custom_call.1} parent=1 // pred_check
      _
    $region3: #{tpu_custom_call.1} parent=1 // pred_check_branch
      %9 = sbr.rel (0) target = $region5
    $region4: #{tpu_custom_call.1} parent=1 // pred_region
      %s11 = ssub.s32 128, 128
      %12 = vsyncadd [#allocation3], %s11
      %s14 = sshll.u32 [#allocation2], 4
      %s15 = int_to_ptr.vmem [resolvable:$true] %s14
      %17 = dma.hbm_to_vmem [thread:$0]  %s0, 128, %s15, [#allocation3]
    $region5: #{tpu_custom_call.1} parent=1 // pred_fallthru
      _
    // Predicated region
    $region6: #{tpu_custom_call.1} parent=1 // pred_check
      _
    $region7: #{tpu_custom_call.1} parent=1 // pred_check_branch
      %19 = sbr.rel (0) target = $region9
    $region8: #{tpu_custom_call.1} parent=1 // pred_region
      %20 = dma.done [#allocation3], 128
    $region9: #{tpu_custom_call.1} parent=1 // pred_fallthru
      _
    %v21 = vld [vmem:[#allocation2] sm:$0xff]
    %v22 = vrot.slane %v21, 4
    %v23 = vmax.f32 %v21, %v22
    %v24 = vrot.slane %v23, 2
    %v25 = vmax.f32 %v23, %v24
    %v26 = vrot.slane %v25, 1
    %v27 = vmax.f32 %v25, %v26
    %v28 = vsub.f32 %v21, %v27
    %v29 = vmul.f32 %v28, 20.0
    %v30 = vmul.f32 %v29, 1.442695
    %v31 = vpow.pop %v30
    %v32 = vlaneseq
    %v33 = vshrl.u32 %v32, 7
    %v34 = vlaneseq
    %v35 = vand.u32 %v34, 127
    %vm36 = vcmp.lt.s32.totalorder %v33, 8
    %vm37 = vcmp.lt.s32.totalorder %v35, 32
    %vm38 = vmand %vm36, %vm37
    %v39 = vsel %vm38, %v31, 0.0
    %40 = vst [vmem:[#allocation5] sm:$0xff] %v39
    %v41 = vrot.slane %v39, 4
    %v42 = vadd.f32 %v39, %v41
    %v43 = vrot.slane %v42, 2
    %v44 = vadd.f32 %v42, %v43
    %v45 = vrot.slane %v44, 1
    %v46 = vadd.f32 %v44, %v45
    %vm47 = vcmp.gt.f32.partialorder %v46, 0.0
    %v48 = vsel %vm47, %v46, 1.0
    %v49 = vrcp.pop %v48
    %v50 = vld [vmem:[#allocation5] sm:$0xff]
    %v51 = vmul.f32 %v50, %v49
    %52 = vadd.xlane.f32.xlu0 %v51
    %v53 = vpop.xlane.xlu0 %52
    %vm54 = vcmp.gt.f32.partialorder %v53, 0.0
    %v55 = vsel %vm54, %v53, 1.0
    %v56 = vrcp.pop %v55
    %v57 = vmul.f32 %v50, %v56
    %v58 = vrot.slane %v57, 4
    %v59 = vadd.f32 %v57, %v58
    %v60 = vrot.slane %v59, 2
    %v61 = vadd.f32 %v59, %v60
    %v62 = vrot.slane %v61, 1
    %v63 = vadd.f32 %v61, %v62
    %vm64 = vcmp.gt.f32.partialorder %v63, 0.0
    %v65 = vsel %vm64, %v63, 1.0
    %v66 = vrcp.pop %v65
    %v67 = vmul.f32 %v50, %v66
    %68 = vadd.xlane.f32.xlu0 %v67
    %v69 = vpop.xlane.xlu0 %68
    %vm70 = vcmp.gt.f32.partialorder %v69, 0.0
    %v71 = vsel %vm70, %v69, 1.0
    %v72 = vrcp.pop %v71
    %v73 = vmul.f32 %v50, %v72
    %v74 = vrot.slane %v73, 4
    %v75 = vadd.f32 %v73, %v74
    %v76 = vrot.slane %v75, 2
    %v77 = vadd.f32 %v75, %v76
    %v78 = vrot.slane %v77, 1
    %v79 = vadd.f32 %v77, %v78
    %vm80 = vcmp.gt.f32.partialorder %v79, 0.0
    %v81 = vsel %vm80, %v79, 1.0
    %v82 = vrcp.pop %v81
    %v83 = vmul.f32 %v50, %v82
    %84 = vadd.xlane.f32.xlu0 %v83
    %v85 = vpop.xlane.xlu0 %84
    %vm86 = vcmp.gt.f32.partialorder %v85, 0.0
    %v87 = vsel %vm86, %v85, 1.0
    %v88 = vrcp.pop %v87
    %v89 = vmul.f32 %v83, %v88
    %90 = vst [vmem:[#allocation5] sm:$0xff] %v89
    // Predicated region
    $region10: #{tpu_custom_call.1} parent=1 // pred_check
      _
    $region11: #{tpu_custom_call.1} parent=1 // pred_check_branch
      %92 = sbr.rel (0) target = $region13
    $region12: #{tpu_custom_call.1} parent=1 // pred_region
      %s94 = ssub.s32 128, 128
      %95 = vsyncadd [#allocation4], %s94
      %s97 = sshll.u32 [#allocation5], 4
      %s98 = int_to_ptr.vmem [resolvable:$true] %s97
      %100 = dma.vmem_to_hbm [thread:$0]  %s98, 128, %s1, [#allocation4]
    $region13: #{tpu_custom_call.1} parent=1 // pred_fallthru
      _
    // Predicated region
    $region14: #{tpu_custom_call.1} parent=1 // pred_check
      _
    $region15: #{tpu_custom_call.1} parent=1 // pred_check_branch
      %102 = sbr.rel (0) target = $region17
    $region16: #{tpu_custom_call.1} parent=1 // pred_region
      %103 = dma.done [#allocation4], 128
    $region17: #{tpu_custom_call.1} parent=1 // pred_fallthru
      _
    %104 = vsyncpa [#allocation3], 1
    %105 = vsyncpa [#allocation4], 1

</llo_original>
